<compile_context>
chip_gen: v6e
topology: v6e:2x2x1
jax: 0.10.0
libtpu: 0.0.40
codegen_flags: <defaults>
</compile_context>

<pallas_src>
from functools import partial

import jax
import jax.numpy as jnp
import numpy as np
from jax import lax
from jax.experimental import pallas as pl
from jax.experimental.pallas import tpu as pltpu

_CHARB_EPS = 1e-3

_LANE = 128
_FLAT_BLOCK_BYTES = 8 * 1024 * 1024    # per-input flat block target
_NAT_BLOCK_BYTES = 16 * 1024 * 1024    # pred+gt+valid blocks for one stage
_VMEM_LIMIT = 48 * 1024 * 1024         # safe on v5e/v6e/v7x (v7x phys = 64 MiB)


def _cdiv(a, b):
    return -(-a // b)


def _round_up(a, b):
    return _cdiv(a, b) * b


def _elem_err(metric, d):
    if metric == "l1":
        return jnp.abs(d)
    if metric == "l2":
        return d * d
    if metric == "charbonnier":
        return jnp.sqrt(d * d + _CHARB_EPS ** 2)
    raise ValueError(metric)


# ---------------------------------------------------------------- kernels ----

def _flat_kernel(metric, rows, tm, nj, lw, needs_mask, x_ref, y_ref, out_ref):
    """sum(metric(x - y)) over a (rows, lw) view; out block = accumulator."""
    j = pl.program_id(1)

    @pl.when(j == 0)
    def _():
        out_ref[...] = jnp.zeros_like(out_ref)

    d = x_ref[...].astype(jnp.float32) - y_ref[...].astype(jnp.float32)
    err = _elem_err(metric, d)

    if not needs_mask:
        out_ref[...] += jnp.sum(err)
    else:
        blk = pl.program_id(0) * nj + j          # unclamped block id
        rows_left = rows - blk * tm              # <=0 for duplicate blocks
        is_full = rows_left >= tm

        @pl.when(is_full)
        def _():
            out_ref[...] += jnp.sum(err)

        @pl.when(jnp.logical_not(is_full))
        def _():
            row = lax.broadcasted_iota(jnp.int32, (tm, lw), 0)
            out_ref[...] += jnp.sum(jnp.where(row < rows_left, err, 0.0))


def _nat_kernel(metric, has_valid, th, H, W, bnd, nh, needs_mask, always_mask,
                *refs):
    """Natural-layout partial sums over (tn, C, th, W) blocks.

    Outputs (per (split, batch-group)):
      esum : sum(err [* valid])      vsum : sum(valid)   (only when has_valid)
    """
    if has_valid:
        p_ref, g_ref, v_ref, esum_ref, vsum_ref = refs
    else:
        p_ref, g_ref, esum_ref = refs
        v_ref = vsum_ref = None
    j = pl.program_id(2)

    @pl.when(j == 0)
    def _():
        esum_ref[...] = jnp.zeros_like(esum_ref)
        if has_valid:
            vsum_ref[...] = jnp.zeros_like(vsum_ref)

    d = p_ref[...].astype(jnp.float32) - g_ref[...].astype(jnp.float32)
    if metric == "l2_sqrt":
        err = jnp.sqrt(jnp.sum(d * d, axis=1, keepdims=True))   # (tn,1,th,W)
    else:
        err = _elem_err(metric, d)                                # (tn,C,th,W)
    v = v_ref[...].astype(jnp.float32) if has_valid else None    # (tn,cv,th,W)

    def accumulate(mask):
        ce = err * v if has_valid else err          # channel-broadcast of valid
        if mask is not None:
            ce = jnp.where(mask, ce, 0.0)           # select -> no NaN leakage
        esum_ref[...] += jnp.sum(ce)
        if has_valid:
            cv_ = v if mask is None else jnp.where(mask, v, 0.0)
            vsum_ref[...] += jnp.sum(cv_)

    if not needs_mask:
        accumulate(None)
    else:
        sb = pl.program_id(0) * nh + j              # unclamped spatial block id
        h0 = sb * th

        def make_mask():
            hrow = h0 + lax.broadcasted_iota(jnp.int32, (1, 1, th, W), 2)
            ok = hrow < (H - bnd)
            if bnd > 0:
                ok = ok & (hrow >= bnd)
                col = lax.broadcasted_iota(jnp.int32, (1, 1, th, W), 3)
                ok = ok & (col >= bnd) & (col < W - bnd)
            return ok

        if always_mask:                             # boundary: every block pays
            accumulate(make_mask())
        else:                                       # only edge/duplicate blocks
            is_edge = (h0 + th) > H

            @pl.when(is_edge)
            def _():
                accumulate(make_mask())

            @pl.when(jnp.logical_not(is_edge))
            def _():
                accumulate(None)


# --------------------------------------------------------------- wrappers ----

def _flat_sum(metric, pred, gt, lw):
    """sum(metric(pred - gt)) over all elements; pred.size % lw == 0."""
    n = int(pred.size)
    rows = n // lw
    x = pred.reshape(rows, lw)          # free bitcast reshape (no pad, no copy)
    y = gt.reshape(rows, lw)

    tm_max = max(8, (_FLAT_BLOCK_BYTES // (lw * 4)) // 8 * 8)
    nsplit = 2 if rows >= 1024 else 1   # megacore split only when worthwhile
    rps = _cdiv(rows, nsplit)
    nj = _cdiv(rps, tm_max)
    tm = _round_up(_cdiv(rps, nj), 8)
    nb = _cdiv(rows, tm)                # real blocks
    nj = _cdiv(nb, nsplit)              # blocks per split
    needs_mask = (nsplit * nj * tm) != rows

    def idx_map(i, j, nj=nj, last=nb - 1):
        return (jnp.minimum(i * nj + j, last), 0)

    out = pl.pallas_call(
        partial(_flat_kernel, metric, rows, tm, nj, lw, needs_mask),
        out_shape=jax.ShapeDtypeStruct((1, nsplit * _LANE), jnp.float32),
        grid_spec=pltpu.PrefetchScalarGridSpec(
            num_scalar_prefetch=0,
            grid=(nsplit, nj),
            in_specs=[pl.BlockSpec((tm, lw), idx_map),
                      pl.BlockSpec((tm, lw), idx_map)],
            out_specs=pl.BlockSpec((1, _LANE), lambda i, j: (0, i))),
        compiler_params=pltpu.CompilerParams(
            dimension_semantics=("parallel", "arbitrary"),
            vmem_limit_bytes=_VMEM_LIMIT),
    )(x, y)
    return jnp.sum(out.reshape(nsplit, _LANE)[:, 0])


def _natural_plan(N, C, H, W, cv, p_isize, v_isize):
    """Pick (tn, th, ng, nsplit, nh, nb) for (tn, C, th, W) blocks."""
    Wp = _round_up(W, 128)
    per_elem = 2 * C * p_isize + cv * v_isize     # bytes per (h, w) per batch
    # largest divisor of N whose full-batch 8-row block still fits the budget
    tn = 1
    for cand in range(N, 0, -1):
        if N % cand == 0 and cand * per_elem * 8 * Wp <= _NAT_BLOCK_BYTES:
            tn = cand
            break
    row_bytes = max(1, tn * per_elem * Wp)
    th = max(8, (_NAT_BLOCK_BYTES // row_bytes) // 8 * 8)
    th = min(th, _round_up(H, 8))                 # th is always a multiple of 8
    nb = _cdiv(H, th)
    ng = N // tn
    # 2-way spatial split for v7x megacore when the batch axis gives no
    # parallelism; avoid it when it would create a costly duplicate block.
    if ng == 1 and nb >= 2 and (nb % 2 == 0 or nb >= 6):
        nsplit = 2
    else:
        nsplit = 1
    nh = _cdiv(nb, nsplit)
    return tn, th, ng, nsplit, nh, nb


def _natural_sums(metric, pred, gt, valid, cv, bnd):
    """Partial sums over the natural (N, C, H, W) layout (no wrapper copies)."""
    N, C, H, W = pred.shape
    has_valid = valid is not None
    p_isize = pred.dtype.itemsize
    v_isize = valid.dtype.itemsize if has_valid else 0
    tn, th, ng, nsplit, nh, nb = _natural_plan(
        N, C, H, W, cv if has_valid else 0, p_isize, v_isize)

    needs_mask = (bnd > 0) or (nsplit * nh * th != H)
    always_mask = bnd > 0

    def pg_map(s, n, j, nh=nh, last=nb - 1):
        return (n, 0, jnp.minimum(s * nh + j, last), 0)

    in_specs = [pl.BlockSpec((tn, C, th, W), pg_map),
                pl.BlockSpec((tn, C, th, W), pg_map)]
    args = [pred, gt]
    if has_valid:
        in_specs.append(pl.BlockSpec((tn, cv, th, W), pg_map))
        args.append(valid)

    n_part = nsplit * ng
    out_spec = pl.BlockSpec((1, _LANE), lambda s, n, j, ng=ng: (0, s * ng + n))
    if has_valid:
        out_shape = (jax.ShapeDtypeStruct((1, n_part * _LANE), jnp.float32),
                     jax.ShapeDtypeStruct((1, n_part * _LANE), jnp.float32))
        out_specs = [out_spec, out_spec]
    else:
        out_shape = jax.ShapeDtypeStruct((1, n_part * _LANE), jnp.float32)
        out_specs = out_spec

    out = pl.pallas_call(
        partial(_nat_kernel, metric, has_valid, th, H, W, bnd, nh,
                needs_mask, always_mask),
        out_shape=out_shape,
        grid_spec=pltpu.PrefetchScalarGridSpec(
            num_scalar_prefetch=0,
            grid=(nsplit, ng, nh),
            in_specs=in_specs,
            out_specs=out_specs),
        compiler_params=pltpu.CompilerParams(
            dimension_semantics=("parallel", "parallel", "arbitrary"),
            vmem_limit_bytes=_VMEM_LIMIT),
    )(*args)

    if has_valid:
        e = jnp.sum(out[0].reshape(n_part, _LANE)[:, 0])
        v = jnp.sum(out[1].reshape(n_part, _LANE)[:, 0])
        return e, v
    return jnp.sum(out.reshape(n_part, _LANE)[:, 0])


def _to_4d(pred, gt, valid):
    if pred.ndim == 4:
        return pred, gt, valid
    if pred.ndim == 3:
        v = None if valid is None else jnp.asarray(valid)[None]
        return pred[None], gt[None], v
    if pred.ndim > 4:
        lead = int(np.prod(pred.shape[:-3]))
        shp = (lead,) + tuple(pred.shape[-3:])
        v = None
        if valid is not None:
            v = jnp.broadcast_to(jnp.asarray(valid), pred.shape).reshape(shp)
        return pred.reshape(shp), gt.reshape(shp), v
    raise ValueError("pred must have at least 3 dims for this metric/option")


# ------------------------------------------------------------------ module ----

class PixelWiseError:
    """JAX/Pallas port of utils.metrics.PixelWiseError."""

    def __init__(self, metric="l1", boundary_ignore=None):
        if metric not in ("l1", "l2", "l2_sqrt", "charbonnier"):
            raise Exception
        self.metric = metric
        self.boundary_ignore = boundary_ignore

    def __call__(self, pred, gt, valid=None):
        b = int(self.boundary_ignore) if self.boundary_ignore else 0
        pred = jnp.asarray(pred)
        gt = jnp.asarray(gt)
        metric = self.metric

        # -------- fast flat path: global mean, no boundary, no valid mask ----
        if metric != "l2_sqrt" and valid is None and b == 0 and pred.size > 0:
            n = int(pred.size)
            lw = next((w for w in (512, 256, 128) if n % w == 0), 0)
            if lw:
                return _flat_sum(metric, pred, gt, lw) / n
            if pred.ndim < 3:
                # degenerate rank with a ragged size: negligible work in jnp
                d = pred.astype(jnp.float32) - gt.astype(jnp.float32)
                return jnp.mean(_elem_err(metric, d))
            # otherwise fall through to the natural-layout kernel below

        pred4, gt4, valid4 = _to_4d(pred, gt, valid)
        N, C, H, W = pred4.shape
        Hc, Wc = H - 2 * b, W - 2 * b

        if metric == "l2_sqrt":
            if valid is not None:
                # PyTorch version raises (lambda has no `reduction` kwarg).
                raise TypeError("l2_sqrt metric does not support a valid mask")
            s = _natural_sums("l2_sqrt", pred4, gt4, None, 0, b)
            return s / (N * Hc * Wc)

        if valid is None:
            s = _natural_sums(metric, pred4, gt4, None, 0, b)
            return s / (N * C * Hc * Wc)

        if metric == "charbonnier":
            # PyTorch version raises (lambda has no `reduction` kwarg).
            raise TypeError("charbonnier metric does not support a valid mask")

        if valid4.shape == pred4.shape:
            v4, cv = valid4, C
        elif valid4.shape == (N, 1, H, W):
            v4, cv = valid4, 1
        else:
            v4, cv = jnp.broadcast_to(valid4, pred4.shape), C
        if v4.dtype == jnp.bool_:
            v4 = v4.astype(jnp.int8)     # 1 byte/elem HBM stream; f32 in-kernel

        esum, vsum = _natural_sums(metric, pred4, gt4, v4, cv, b)
        # vsum * (C/cv) == valid.sum() * elem_ratio from the PyTorch code.
        return esum / (vsum * (C / cv) + 1e-12)


# -------------------------------------------------------------------- main ----

if __name__ == "__main__":
    key = jax.random.PRNGKey(0)

    def ref_elem(metric, d):
        if metric == "l1":
            return jnp.abs(d)
        if metric == "l2":
            return d * d
        return jnp.sqrt(d * d + _CHARB_EPS ** 2)

    def ref_module(metric, b, pred, gt, valid=None):
        p, g, v = pred, gt, valid
        if b:
            p = p[..., b:-b, b:-b]
            g = g[..., b:-b, b:-b]
            if v is not None:
                v = v[..., b:-b, b:-b]
        if metric == "l2_sqrt":
            return jnp.mean(jnp.sqrt(((p - g) ** 2).sum(axis=-3)))
        err = ref_elem(metric, p - g)
        if v is None:
            return jnp.mean(err)
        vf = v.astype(jnp.float32)
        elem_ratio = err.size / v.size
        return (err * vf).sum() / (vf.sum() * elem_ratio + 1e-12)

    cfgs = [
        ((2, 4, 16, 16), ("l1", "l2", "charbonnier")),  # flat (masked) + natural
        ((2, 3, 37, 53), ("l1", "l2")),                 # ragged dims -> natural
        ((1, 4, 64, 128), ("l2",)),                     # exact-cover flat, N=1
    ]

    checks = []
    for shape, metrics in cfgs:
        key, k1, k2, k3 = jax.random.split(key, 4)
        pred = jax.random.normal(k1, shape, dtype=jnp.float32)
        gt = jax.random.normal(k2, shape, dtype=jnp.float32)
        valid = jax.random.bernoulli(k3, 0.7, (shape[0], 1, shape[2], shape[3]))

        for b in (None, 2):
            bb = b or 0
            for metric in metrics:
                mod = PixelWiseError(metric, b)
                checks.append((f"{metric} b={b} {shape}",
                               mod(pred, gt),
                               ref_module(metric, bb, pred, gt)))
                if metric in ("l1", "l2"):
                    checks.append((f"{metric}+valid b={b} {shape}",
                                   mod(pred, gt, valid),
                                   ref_module(metric, bb, pred, gt, valid)))
            mod = PixelWiseError("l2_sqrt", b)
            checks.append((f"l2_sqrt b={b} {shape}",
                           mod(pred, gt),
                           ref_module("l2_sqrt", bb, pred, gt)))

    for name, out, ref in checks:
        out = jax.block_until_ready(out)
        np.testing.assert_allclose(np.asarray(out), np.asarray(ref),
                                   rtol=1e-5, atol=1e-5, err_msg=name)

    print("KERNEL_OK")
</pallas_src>

<mosaic_0001>
module attributes {stable_mosaic.version = 11 : i64} {
  func.func @_flat_kernel(%arg0: i32, %arg1: i32, %arg2: memref<8x512xf32, #tpu.memory_space<vmem>>, %arg3: memref<8x512xf32, #tpu.memory_space<vmem>>, %arg4: memref<1x128xf32, #tpu.memory_space<vmem>>) attributes {dimension_semantics = [#tpu.dimension_semantics<parallel>, #tpu.dimension_semantics<arbitrary>], iteration_bounds = array<i64: 1, 1>, scalar_prefetch = 0 : i64, scratch_operands = 0 : i64, tpu.core_type = #tpu.core_type<tc>, window_params = [{transform_indices = @transform_0, window_bounds = array<i64: 8, 512>}, {transform_indices = @transform_1, window_bounds = array<i64: 8, 512>}, {transform_indices = @transform_2, window_bounds = array<i64: 1, 128>}]} {
    %c0_i32 = arith.constant 0 : i32
    %0 = arith.cmpi eq, %arg1, %c0_i32 : i32
    %1 = arith.extui %0 : i1 to i32
    %c0_i32_0 = arith.constant 0 : i32
    %2 = arith.cmpi ne, %1, %c0_i32_0 : i32
    scf.if %2 {
      %cst = arith.constant 0.000000e+00 : f32
      %17 = vector.broadcast %cst : f32 to vector<1x128xf32>
      %c0_7 = arith.constant 0 : index
      %c0_8 = arith.constant 0 : index
      %18 = vector.load %arg4[%c0_7, %c0_8] : memref<1x128xf32, #tpu.memory_space<vmem>>, vector<1x128xf32>
      tpu.vector_store %arg4[%c0_7, %c0_8], %17 {strides = array<i32>} : memref<1x128xf32, #tpu.memory_space<vmem>>, vector<1x128xf32>,
    } else {
    }
    %c0 = arith.constant 0 : index
    %c0_1 = arith.constant 0 : index
    %3 = vector.load %arg2[%c0, %c0_1] : memref<8x512xf32, #tpu.memory_space<vmem>>, vector<8x512xf32>
    %c0_2 = arith.constant 0 : index
    %c0_3 = arith.constant 0 : index
    %4 = vector.load %arg3[%c0_2, %c0_3] : memref<8x512xf32, #tpu.memory_space<vmem>>, vector<8x512xf32>
    %5 = arith.subf %3, %4 : vector<8x512xf32>
    %6 = math.absf %5 : vector<8x512xf32>
    %c1_i32 = arith.constant 1 : i32
    %7 = arith.muli %arg0, %c1_i32 : i32
    %8 = arith.addi %7, %arg1 : i32
    %c8_i32 = arith.constant 8 : i32
    %9 = arith.muli %8, %c8_i32 : i32
    %c4_i32 = arith.constant 4 : i32
    %10 = arith.subi %c4_i32, %9 : i32
    %c8_i32_4 = arith.constant 8 : i32
    %11 = arith.cmpi sge, %10, %c8_i32_4 : i32
    %12 = arith.extui %11 : i1 to i32
    %c0_i32_5 = arith.constant 0 : i32
    %13 = arith.cmpi ne, %12, %c0_i32_5 : i32
    scf.if %13 {
      %c0_7 = arith.constant 0 : index
      %c0_8 = arith.constant 0 : index
      %17 = vector.load %arg4[%c0_7, %c0_8] : memref<1x128xf32, #tpu.memory_space<vmem>>, vector<1x128xf32>
      %18 = vector.shape_cast %6 : vector<8x512xf32> to vector<1x8x512xf32>
      %cst = arith.constant dense<0.000000e+00> : vector<1xf32>
      %19 = vector.multi_reduction <add>, %18, %cst [1, 2] : vector<1x8x512xf32> to vector<1xf32>
      %20 = vector.shape_cast %19 : vector<1xf32> to vector<1x1x1xf32>
      %21 = vector.extract %20[0, 0, 0] : f32 from vector<1x1x1xf32>
      %22 = vector.broadcast %21 : f32 to vector<1x128xf32>
      %23 = arith.addf %17, %22 : vector<1x128xf32>
      %c0_9 = arith.constant 0 : index
      %c0_10 = arith.constant 0 : index
      %24 = vector.load %arg4[%c0_9, %c0_10] : memref<1x128xf32, #tpu.memory_space<vmem>>, vector<1x128xf32>
      tpu.vector_store %arg4[%c0_9, %c0_10], %23 {strides = array<i32>} : memref<1x128xf32, #tpu.memory_space<vmem>>, vector<1x128xf32>,
    } else {
    }
    %true = arith.constant true
    %14 = arith.xori %11, %true : i1
    %15 = arith.extui %14 : i1 to i32
    %c0_i32_6 = arith.constant 0 : i32
    %16 = arith.cmpi ne, %15, %c0_i32_6 : i32
    scf.if %16 {
      %17 = tpu.iota {dimensions = array<i32: 0>} : vector<8x512xi32>
      %c0_7 = arith.constant 0 : index
      %c0_8 = arith.constant 0 : index
      %18 = vector.load %arg4[%c0_7, %c0_8] : memref<1x128xf32, #tpu.memory_space<vmem>>, vector<1x128xf32>
      %19 = vector.broadcast %10 : i32 to vector<8x512xi32>
      %20 = arith.cmpi slt, %17, %19 : vector<8x512xi32>
      %cst = arith.constant 0.000000e+00 : f32
      %21 = vector.broadcast %cst : f32 to vector<8x512xf32>
      %22 = arith.select %20, %6, %21 : vector<8x512xi1>, vector<8x512xf32>
      %23 = vector.shape_cast %22 : vector<8x512xf32> to vector<1x8x512xf32>
      %cst_9 = arith.constant dense<0.000000e+00> : vector<1xf32>
      %24 = vector.multi_reduction <add>, %23, %cst_9 [1, 2] : vector<1x8x512xf32> to vector<1xf32>
      %25 = vector.shape_cast %24 : vector<1xf32> to vector<1x1x1xf32>
      %26 = vector.extract %25[0, 0, 0] : f32 from vector<1x1x1xf32>
      %27 = vector.broadcast %26 : f32 to vector<1x128xf32>
      %28 = arith.addf %18, %27 : vector<1x128xf32>
      %c0_10 = arith.constant 0 : index
      %c0_11 = arith.constant 0 : index
      %29 = vector.load %arg4[%c0_10, %c0_11] : memref<1x128xf32, #tpu.memory_space<vmem>>, vector<1x128xf32>
      tpu.vector_store %arg4[%c0_10, %c0_11], %28 {strides = array<i32>} : memref<1x128xf32, #tpu.memory_space<vmem>>, vector<1x128xf32>,
    } else {
    }
    return
  }
  func.func @transform_0(%arg0: i32, %arg1: i32) -> (i32, i32) {
    %c1_i32 = arith.constant 1 : i32
    %0 = arith.muli %arg0, %c1_i32 : i32
    %1 = arith.addi %0, %arg1 : i32
    %c0_i32 = arith.constant 0 : i32
    %2 = arith.minsi %1, %c0_i32 : i32
    %c0_i32_0 = arith.constant 0 : i32
    %c0_i32_1 = arith.constant 0 : i32
    return %2, %c0_i32_0 : i32, i32
  }
  func.func @transform_1(%arg0: i32, %arg1: i32) -> (i32, i32) {
    %c1_i32 = arith.constant 1 : i32
    %0 = arith.muli %arg0, %c1_i32 : i32
    %1 = arith.addi %0, %arg1 : i32
    %c0_i32 = arith.constant 0 : i32
    %2 = arith.minsi %1, %c0_i32 : i32
    %c0_i32_0 = arith.constant 0 : i32
    %c0_i32_1 = arith.constant 0 : i32
    return %2, %c0_i32_0 : i32, i32
  }
  func.func @transform_2(%arg0: i32, %arg1: i32) -> (i32, i32) {
    %c0_i32 = arith.constant 0 : i32
    %c0_i32_0 = arith.constant 0 : i32
    return %c0_i32, %arg0 : i32, i32
  }
}

</mosaic_0001>

<llo_original>
// kernel: tpu_custom_call.1
$region0: #{tpu_custom_call.1}
  #allocation0 [shape = 'u32[]', space=smem, size = 0x4, offset = 0x4, fixed_abs, tag = 'smem constant byte address 0x4 - core index']
  #allocation1 [shape = 'u32[144,128]{1,0:T(1,128)}', space=vmem, size = 0x12000, scoped, tag = 'internal scratch']
  %s0 = inlined_call_operand.hbm [shape: f32[4,512], index: 0, kind: input, shape index: {}]
  %s1 = inlined_call_operand.hbm [shape: f32[4,512], index: 1, kind: input, shape index: {}]
  %s2 = inlined_call_operand.hbm [shape: f32[1,128], index: 2, kind: output, shape index: {}]
  %s3 = sld [smem:[#allocation0]]
  $region38: #{tpu_custom_call.1} parent=0
    _
  %s5 = ssub.s32 1, %s3
  %s6 = scalar_select 0, %s5, %s3
  $region1: #{tpu_custom_call.1} parent=0
    #allocation2 [shape = 'u8[16384]{0}', space=vmem, size = 0x4000, scoped, tag = 'input window, operand 0, single buffered']
    #allocation3 [shape = 's32[1]{0}', space=sflag, size = 0x4, scoped, tag = 'scoped memory for tpu_custom_call.1']
    #allocation4 [shape = 's32[1]{0}', space=sflag, size = 0x4, scoped, tag = 'scoped memory for tpu_custom_call.1']
    #allocation5 [shape = 'u8[16384]{0}', space=vmem, size = 0x4000, scoped, tag = 'input window, operand 1, single buffered']
    #allocation6 [shape = 's32[1]{0}', space=sflag, size = 0x4, scoped, tag = 'scoped memory for tpu_custom_call.1']
    #allocation7 [shape = 'u8[512]{0}', space=vmem, size = 0x400, scoped, tag = 'output window, operand 0, single buffered']
    %7 = vsyncpa [#allocation3], 0
    %8 = vsyncpa [#allocation6], 0
    %9 = vsyncpa [#allocation4], 0
    // Predicated region
    $region2: #{tpu_custom_call.1} parent=1 // pred_check
      _
    $region3: #{tpu_custom_call.1} parent=1 // pred_check_branch
      %11 = sbr.rel (0) target = $region5
    $region4: #{tpu_custom_call.1} parent=1 // pred_region
      %s12 = sadd.s32 0, 0
      %p13 = scmp.lt.s32.totalorder %s12, 0
      %s14 = scalar_select %p13, %s12, 0
      %s15 = smul.u32 2, %s14
      %s16 = ssub.s32 1, %s15
      %s17 = smul.u32 64, %s16
      %s18 = smul.u32 %s17, 4
      %s20 = ssub.s32 512, %s18
      %21 = vsyncadd [#allocation3], %s20
      %p22 = scmp.ne.s32.totalorder 0, %s18
      %s23 = smul.addr %s15, 4
      %s24 = smul.addr %s23, 64
      %s25 = scalar_lea.hbm %s0, %s24
      %s26 = smul.u32 16, %s16
      %s27 = sshll.u32 [#allocation2], 4
      %s28 = int_to_ptr.vmem [resolvable:$true] %s27
      %s29 = sshll.u32 %s26, 4
      %33 = dma.hbm_to_vmem [thread:$0]  (%p22), %s25, %s29, %s28, [#allocation3], 256, 256, 16
    $region5: #{tpu_custom_call.1} parent=1 // pred_fallthru
      _
    // Predicated region
    $region6: #{tpu_custom_call.1} parent=1 // pred_check
      _
    $region7: #{tpu_custom_call.1} parent=1 // pred_check_branch
      %35 = sbr.rel (0) target = $region9
    $region8: #{tpu_custom_call.1} parent=1 // pred_region
      %s36 = sadd.s32 0, 0
      %p37 = scmp.lt.s32.totalorder %s36, 0
      %s38 = scalar_select %p37, %s36, 0
      %s39 = smul.u32 2, %s38
      %s40 = ssub.s32 1, %s39
      %s41 = smul.u32 64, %s40
      %s42 = smul.u32 %s41, 4
      %s44 = ssub.s32 512, %s42
      %45 = vsyncadd [#allocation6], %s44
      %p46 = scmp.ne.s32.totalorder 0, %s42
      %s47 = smul.addr %s39, 4
      %s48 = smul.addr %s47, 64
      %s49 = scalar_lea.hbm %s1, %s48
      %s50 = smul.u32 16, %s40
      %s51 = sshll.u32 [#allocation5], 4
      %s52 = int_to_ptr.vmem [resolvable:$true] %s51
      %s53 = sshll.u32 %s50, 4
      %57 = dma.hbm_to_vmem [thread:$0]  (%p46), %s49, %s53, %s52, [#allocation6], 256, 256, 16
    $region9: #{tpu_custom_call.1} parent=1 // pred_fallthru
      _
    // Predicated region
    $region10: #{tpu_custom_call.1} parent=1 // pred_check
      _
    $region11: #{tpu_custom_call.1} parent=1 // pred_check_branch
      %59 = sbr.rel (0) target = $region13
    $region12: #{tpu_custom_call.1} parent=1 // pred_region
      %60 = dma.done [#allocation3], 512
    $region13: #{tpu_custom_call.1} parent=1 // pred_fallthru
      _
    // Predicated region
    $region14: #{tpu_custom_call.1} parent=1 // pred_check
      _
    $region15: #{tpu_custom_call.1} parent=1 // pred_check_branch
      %62 = sbr.rel (0) target = $region17
    $region16: #{tpu_custom_call.1} parent=1 // pred_region
      %63 = dma.done [#allocation6], 512
    $region17: #{tpu_custom_call.1} parent=1 // pred_fallthru
      _
    %s64 = sadd.s32 0, 0
    %p65 = scmp.lt.s32.totalorder %s64, 0
    %s66 = scalar_select %p65, %s64, 0
    %s67 = smul.u32 2, %s66
    %s68 = ssub.s32 1, %s67
    %s69 = smul.u32 64, %s68
    %s70 = smul.u32 %s69, 4
    %s71 = sadd.s32 0, 0
    %p72 = scmp.lt.s32.totalorder %s71, 0
    %s73 = scalar_select %p72, %s71, 0
    %s74 = smul.u32 2, %s73
    %s75 = ssub.s32 1, %s74
    %s76 = smul.u32 64, %s75
    %s77 = smul.u32 %s76, 4
    %p78 = scmp.eq.s32.totalorder 0, 0
    // Predicated region
    $region18: #{tpu_custom_call.1} parent=1 // pred_check
      %p79 = pneg %p78
    $region19: #{tpu_custom_call.1} parent=1 // pred_check_branch
      %81 = sbr.rel (%p79) target = $region21
    $region20: #{tpu_custom_call.1} parent=1 // pred_region
      %82 = vst [vmem:[#allocation7] sm:$0x1] 0.0
    $region21: #{tpu_custom_call.1} parent=1 // pred_fallthru
      _
    %v83 = vld [vmem:[#allocation2] sm:$0xff]
    %v84 = vld [vmem:[#allocation2 + $0x8] sm:$0xff]
    %v85 = vld [vmem:[#allocation2 + $0x10] sm:$0xff]
    %v86 = vld [vmem:[#allocation2 + $0x18] sm:$0xff]
    %v87 = vld [vmem:[#allocation5] sm:$0xff]
    %v88 = vld [vmem:[#allocation5 + $0x8] sm:$0xff]
    %v89 = vld [vmem:[#allocation5 + $0x10] sm:$0xff]
    %v90 = vld [vmem:[#allocation5 + $0x18] sm:$0xff]
    %v91 = vsub.f32 %v83, %v87
    %v92 = vsub.f32 %v84, %v88
    %v93 = vsub.f32 %v85, %v89
    %v94 = vsub.f32 %v86, %v90
    %v95 = vand.u32 2147483647, %v91
    %v96 = vand.u32 2147483647, %v92
    %v97 = vand.u32 2147483647, %v93
    %v98 = vand.u32 2147483647, %v94
    %s99 = sadd.s32 0, 0
    %s100 = smul.u32 %s99, 8
    %s101 = ssub.s32 4, %s100
    %p102 = scmp.ge.s32.totalorder %s101, 8
    // Predicated region
    $region22: #{tpu_custom_call.1} parent=1 // pred_check
      %p103 = pneg %p102
    $region23: #{tpu_custom_call.1} parent=1 // pred_check_branch
      %105 = sbr.rel (%p103) target = $region25
    $region24: #{tpu_custom_call.1} parent=1 // pred_region
      %v106 = vld [vmem:[#allocation7] sm:$0x1]
      %v111 = vcombine.low %v95, %v97
      %v112 = vcombine.high %v95, %v97
      %v113 = vcombine.low %v96, %v98
      %v114 = vcombine.high %v96, %v98
      %v119 = vadd.f32 %v111, %v112
      %v120 = vadd.f32 %v119, %v113
      %v121 = vadd.f32 %v120, %v114
      %122 = vadd.xlane.f32.xlu0 %v121
      %v123 = vpop.xlane.xlu0 %122
      %v124 = vrot.slane %v123, 4
      %v125 = vadd.f32 %v123, %v124
      %v126 = vrot.slane %v125, 2
      %v127 = vadd.f32 %v125, %v126
      %v128 = vrot.slane %v127, 1
      %v129 = vadd.f32 %v127, %v128
      %s130 = vtos %v129
      %v131 = vstv %s130
      %v132 = vadd.f32 %v106, %v131
      %133 = vst [vmem:[#allocation7] sm:$0x1] %v132
    $region25: #{tpu_custom_call.1} parent=1 // pred_fallthru
      _
    %p134 = scmp.lt.s32.totalorder %s101, 8
    // Predicated region
    $region26: #{tpu_custom_call.1} parent=1 // pred_check
      %p135 = pneg %p134
    $region27: #{tpu_custom_call.1} parent=1 // pred_check_branch
      %137 = sbr.rel (%p135) target = $region29
    $region28: #{tpu_custom_call.1} parent=1 // pred_region
      %v138 = vlaneseq
      %v139 = vshrl.u32 %v138, 7
      %v140 = vld [vmem:[#allocation7] sm:$0x1]
      %v141 = vstv %s101
      %vm142 = vcmp.lt.s32.totalorder %v139, %v141
      %v147 = vcombine.low %v95, %v97
      %v148 = vcombine.high %v95, %v97
      %v149 = vcombine.low %v96, %v98
      %v150 = vcombine.high %v96, %v98
      %v155 = vsel %vm142, %v147, 0.0
      %v156 = vsel %vm142, %v148, 0.0
      %v157 = vsel %vm142, %v149, 0.0
      %v158 = vsel %vm142, %v150, 0.0
      %v159 = vadd.f32 %v155, %v156
      %v160 = vadd.f32 %v159, %v157
      %v161 = vadd.f32 %v160, %v158
      %162 = vadd.xlane.f32.xlu0 %v161
      %v163 = vpop.xlane.xlu0 %162
      %v164 = vrot.slane %v163, 4
      %v165 = vadd.f32 %v163, %v164
      %v166 = vrot.slane %v165, 2
      %v167 = vadd.f32 %v165, %v166
      %v168 = vrot.slane %v167, 1
      %v169 = vadd.f32 %v167, %v168
      %s170 = vtos %v169
      %v171 = vstv %s170
      %v172 = vadd.f32 %v140, %v171
      %173 = vst [vmem:[#allocation7] sm:$0x1] %v172
    $region29: #{tpu_custom_call.1} parent=1 // pred_fallthru
      _
    // Predicated region
    $region30: #{tpu_custom_call.1} parent=1 // pred_check
      _
    $region31: #{tpu_custom_call.1} parent=1 // pred_check_branch
      %175 = sbr.rel (0) target = $region33
    $region32: #{tpu_custom_call.1} parent=1 // pred_region
      %s177 = ssub.s32 16, 16
      %178 = vsyncadd [#allocation4], %s177
      %s180 = sshll.u32 [#allocation7], 4
      %s181 = int_to_ptr.vmem [resolvable:$true] %s180
      %183 = dma.vmem_to_hbm [thread:$0]  %s181, 16, %s2, [#allocation4]
    $region33: #{tpu_custom_call.1} parent=1 // pred_fallthru
      _
    // Predicated region
    $region34: #{tpu_custom_call.1} parent=1 // pred_check
      _
    $region35: #{tpu_custom_call.1} parent=1 // pred_check_branch
      %185 = sbr.rel (0) target = $region37
    $region36: #{tpu_custom_call.1} parent=1 // pred_region
      %186 = dma.done [#allocation4], 16
    $region37: #{tpu_custom_call.1} parent=1 // pred_fallthru
      _
    %187 = vsyncpa [#allocation3], 1
    %188 = vsyncpa [#allocation6], 1
    %189 = vsyncpa [#allocation4], 1

</llo_original>
